<compile_context>
chip_gen: v7x
topology: tpu7x:2x2x1
jax: 0.10.0
libtpu: 0.0.40
codegen_flags: <defaults>
</compile_context>

<pallas_src>
import jax
import jax.numpy as jnp
from jax.experimental import pallas as pl
from jax.experimental.pallas import tpu as pltpu


def _embedder_kernel(x_ref, w1_ref, b1_ref, w2_ref, b2_ref, o_ref):
    # x_ref: (tmp, P*c_in), w1: (P*c_in, P*c_out) block-diag, b1: (1, P*c_out)
    # w2: (P*c_out, P*c_out) block-diag, b2: (1, P*c_out), o_ref: (tmp, P*c_out)
    h = jnp.dot(x_ref[...], w1_ref[...], preferred_element_type=jnp.float32)
    h = jnp.maximum(h + b1_ref[...], 0.0)  # ReLU
    o = jnp.dot(h, w2_ref[...], preferred_element_type=jnp.float32)
    o_ref[...] = (o + b2_ref[...]).astype(o_ref.dtype)


def template_single_embedder(x, w1, b1, w2, b2, *, tm=2048):
    """x: [*, N_templ, N_res, c_in] -> [*, N_templ, N_res, c_out].

    `tm` is the row tile in *logical* rows (default 2048).
    """
    *lead, c_in = x.shape
    c_out = w1.shape[1]
    m = 1
    for d in lead:
        m *= d
    x2 = x.reshape(m, c_in)

    # Lane-packing factor: P logical rows share one 128-wide output row.
    p = 128 // c_out if (0 < c_out < 128 and 128 % c_out == 0) else 1

    # Pad M up to a multiple of P (at most P-1 zero rows; only copies if needed).
    m_pad = ((m + p - 1) // p) * p
    if m_pad != m:
        x2 = jnp.pad(x2, ((0, m_pad - m), (0, 0)))
    mp = m_pad // p                       # packed rows
    pc_in, pc_out = p * c_in, p * c_out   # packed channel widths

    # Free row-major reinterpretation: (m_pad, c_in) -> (mp, P*c_in).
    xp = x2.reshape(mp, pc_in)

    # Replicated block-diagonal weights / tiled biases (tiny, stay resident).
    if p > 1:
        eye_p = jnp.eye(p, dtype=w1.dtype)
        w1_p = jnp.kron(eye_p, w1)                         # (P*c_in, P*c_out)
        w2_p = jnp.kron(jnp.eye(p, dtype=w2.dtype), w2)    # (P*c_out, P*c_out)
        b1_p = jnp.tile(b1.reshape(1, c_out), (1, p))      # (1, P*c_out)
        b2_p = jnp.tile(b2.reshape(1, c_out), (1, p))
    else:
        w1_p, w2_p = w1, w2
        b1_p, b2_p = b1.reshape(1, c_out), b2.reshape(1, c_out)

    # Packed row tile: tm logical rows -> tm // P packed rows (clamped to mp so
    # the block either divides by 8 or equals the full dim).
    tmp_rows = max(tm // p, 8)
    tmp_rows = min(tmp_rows, mp)
    grid = (pl.cdiv(mp, tmp_rows),)

    # Advisory cost estimate: tiny flops, large bytes (keeps XLA from treating
    # this as compute-heavy).
    itemsize = jnp.dtype(x.dtype).itemsize
    w_itemsize = jnp.dtype(w1.dtype).itemsize
    flops = 2 * mp * (pc_in * pc_out + pc_out * pc_out)
    bytes_accessed = (
        mp * pc_in * itemsize
        + mp * pc_out * itemsize
        + (pc_in * pc_out + pc_out * pc_out + 2 * pc_out) * w_itemsize
    )
    cost = pl.CostEstimate(
        flops=flops, transcendentals=0, bytes_accessed=bytes_accessed
    )

    grid_spec = pl.GridSpec(
        grid=grid,
        in_specs=[
            pl.BlockSpec((tmp_rows, pc_in), lambda i: (i, 0)),
            pl.BlockSpec((pc_in, pc_out), lambda i: (0, 0)),   # resident
            pl.BlockSpec((1, pc_out), lambda i: (0, 0)),       # resident
            pl.BlockSpec((pc_out, pc_out), lambda i: (0, 0)),  # resident
            pl.BlockSpec((1, pc_out), lambda i: (0, 0)),       # resident
        ],
        out_specs=pl.BlockSpec((tmp_rows, pc_out), lambda i: (i, 0)),
    )

    out_p = pl.pallas_call(
        _embedder_kernel,
        out_shape=jax.ShapeDtypeStruct((mp, pc_out), x.dtype),
        grid_spec=grid_spec,
        compiler_params=pltpu.CompilerParams(
            dimension_semantics=("parallel",),
        ),
        cost_estimate=cost,
    )(xp, w1_p, b1_p, w2_p, b2_p)

    # Free reinterpretation back to (m_pad, c_out); drop any pad rows.
    out = out_p.reshape(m_pad, c_out)
    if m_pad != m:
        out = out[:m]
    return out.reshape(*lead, c_out)


def _ref_forward(x, w1, b1, w2, b2):
    h = jnp.maximum(x @ w1 + b1, 0.0)
    return h @ w2 + b2


if __name__ == "__main__":
    # Small shapes consistent with the module:
    # template_angle_feat: [batch, N_templ, N_res, c_in], c_in=57 (OpenFold default)
    batch, n_templ, n_res = 2, 4, 16
    c_in, c_out = 57, 32

    key = jax.random.PRNGKey(0)
    kx, kw1, kb1, kw2, kb2 = jax.random.split(key, 5)

    x = jax.random.normal(kx, (batch, n_templ, n_res, c_in), dtype=jnp.float32)

    # Deterministic "relu"-style (He) init for the two Linear layers.
    w1 = jax.random.normal(kw1, (c_in, c_out), dtype=jnp.float32) * (2.0 / c_in) ** 0.5
    b1 = jax.random.normal(kb1, (c_out,), dtype=jnp.float32) * 0.01
    w2 = jax.random.normal(kw2, (c_out, c_out), dtype=jnp.float32) * (2.0 / c_out) ** 0.5
    b2 = jax.random.normal(kb2, (c_out,), dtype=jnp.float32) * 0.01

    out = template_single_embedder(x, w1, b1, w2, b2)
    out = jax.block_until_ready(out)

    ref = _ref_forward(x, w1, b1, w2, b2)
    assert out.shape == (batch, n_templ, n_res, c_out), out.shape
    assert jnp.allclose(out, ref, atol=1e-4, rtol=1e-4), "mismatch vs reference"

    # Robustness check: M not divisible by the lane-packing factor (pad path).
    x_odd = jax.random.normal(kx, (1, 1, 13, c_in), dtype=jnp.float32)
    out_odd = jax.block_until_ready(template_single_embedder(x_odd, w1, b1, w2, b2))
    ref_odd = _ref_forward(x_odd, w1, b1, w2, b2)
    assert out_odd.shape == (1, 1, 13, c_out), out_odd.shape
    assert jnp.allclose(out_odd, ref_odd, atol=1e-4, rtol=1e-4), "mismatch (pad path)"

    print("KERNEL_OK")
</pallas_src>

<mosaic_0001>
module attributes {stable_mosaic.version = 11 : i64} {
  func.func @_embedder_kernel(%arg0: i32, %arg1: memref<32x228xf32, #tpu.memory_space<vmem>>, %arg2: memref<228x128xf32, #tpu.memory_space<vmem>>, %arg3: memref<1x128xf32, #tpu.memory_space<vmem>>, %arg4: memref<128x128xf32, #tpu.memory_space<vmem>>, %arg5: memref<1x128xf32, #tpu.memory_space<vmem>>, %arg6: memref<32x128xf32, #tpu.memory_space<vmem>>) attributes {dimension_semantics = [#tpu.dimension_semantics<parallel>], iteration_bounds = array<i64: 1>, scalar_prefetch = 0 : i64, scratch_operands = 0 : i64, tpu.core_type = #tpu.core_type<tc>, window_params = [{transform_indices = @transform_0, window_bounds = array<i64: 32, 228>}, {pipeline_mode = #tpu.pipeline_mode<synchronous>, transform_indices = @transform_1, window_bounds = array<i64: 228, 128>}, {pipeline_mode = #tpu.pipeline_mode<synchronous>, transform_indices = @transform_2, window_bounds = array<i64: 1, 128>}, {pipeline_mode = #tpu.pipeline_mode<synchronous>, transform_indices = @transform_3, window_bounds = array<i64: 128, 128>}, {pipeline_mode = #tpu.pipeline_mode<synchronous>, transform_indices = @transform_4, window_bounds = array<i64: 1, 128>}, {transform_indices = @transform_5, window_bounds = array<i64: 32, 128>}]} {
    %c0 = arith.constant 0 : index
    %c0_0 = arith.constant 0 : index
    %0 = vector.load %arg1[%c0, %c0_0] : memref<32x228xf32, #tpu.memory_space<vmem>>, vector<32x228xf32>
    %c0_1 = arith.constant 0 : index
    %c0_2 = arith.constant 0 : index
    %1 = vector.load %arg2[%c0_1, %c0_2] : memref<228x128xf32, #tpu.memory_space<vmem>>, vector<228x128xf32>
    %cst = arith.constant dense<0.000000e+00> : vector<32x128xf32>
    %2 = tpu.matmul %0, %1, %cst {dimension_numbers = #tpu.dot_dimension_numbers<[1], [0], [0], [1], [0, 0, 1, 1], [], []>} : vector<32x228xf32>, vector<228x128xf32>, vector<32x128xf32> -> vector<32x128xf32>
    %c0_3 = arith.constant 0 : index
    %c0_4 = arith.constant 0 : index
    %3 = vector.load %arg3[%c0_3, %c0_4] : memref<1x128xf32, #tpu.memory_space<vmem>>, vector<1x128xf32>
    %4 = vector.broadcast %3 : vector<1x128xf32> to vector<32x128xf32>
    %5 = arith.addf %2, %4 : vector<32x128xf32>
    %cst_5 = arith.constant 0.000000e+00 : f32
    %6 = vector.broadcast %cst_5 : f32 to vector<32x128xf32>
    %7 = arith.maximumf %5, %6 : vector<32x128xf32>
    %c0_6 = arith.constant 0 : index
    %c0_7 = arith.constant 0 : index
    %8 = vector.load %arg4[%c0_6, %c0_7] : memref<128x128xf32, #tpu.memory_space<vmem>>, vector<128x128xf32>
    %cst_8 = arith.constant dense<0.000000e+00> : vector<32x128xf32>
    %9 = tpu.matmul %7, %8, %cst_8 {dimension_numbers = #tpu.dot_dimension_numbers<[1], [0], [0], [1], [0, 0, 1, 1], [], []>} : vector<32x128xf32>, vector<128x128xf32>, vector<32x128xf32> -> vector<32x128xf32>
    %c0_9 = arith.constant 0 : index
    %c0_10 = arith.constant 0 : index
    %10 = vector.load %arg5[%c0_9, %c0_10] : memref<1x128xf32, #tpu.memory_space<vmem>>, vector<1x128xf32>
    %11 = vector.broadcast %10 : vector<1x128xf32> to vector<32x128xf32>
    %12 = arith.addf %9, %11 : vector<32x128xf32>
    %c0_11 = arith.constant 0 : index
    %c0_12 = arith.constant 0 : index
    %13 = vector.load %arg6[%c0_11, %c0_12] : memref<32x128xf32, #tpu.memory_space<vmem>>, vector<32x128xf32>
    tpu.vector_store %arg6[%c0_11, %c0_12], %12 {strides = array<i32>} : memref<32x128xf32, #tpu.memory_space<vmem>>, vector<32x128xf32>,
    return
  }
  func.func @transform_0(%arg0: i32) -> (i32, i32) {
    %c0_i32 = arith.constant 0 : i32
    %c0_i32_0 = arith.constant 0 : i32
    return %arg0, %c0_i32 : i32, i32
  }
  func.func @transform_1(%arg0: i32) -> (i32, i32) {
    %c0_i32 = arith.constant 0 : i32
    %c0_i32_0 = arith.constant 0 : i32
    %c0_i32_1 = arith.constant 0 : i32
    return %c0_i32, %c0_i32_0 : i32, i32
  }
  func.func @transform_2(%arg0: i32) -> (i32, i32) {
    %c0_i32 = arith.constant 0 : i32
    %c0_i32_0 = arith.constant 0 : i32
    %c0_i32_1 = arith.constant 0 : i32
    return %c0_i32, %c0_i32_0 : i32, i32
  }
  func.func @transform_3(%arg0: i32) -> (i32, i32) {
    %c0_i32 = arith.constant 0 : i32
    %c0_i32_0 = arith.constant 0 : i32
    %c0_i32_1 = arith.constant 0 : i32
    return %c0_i32, %c0_i32_0 : i32, i32
  }
  func.func @transform_4(%arg0: i32) -> (i32, i32) {
    %c0_i32 = arith.constant 0 : i32
    %c0_i32_0 = arith.constant 0 : i32
    %c0_i32_1 = arith.constant 0 : i32
    return %c0_i32, %c0_i32_0 : i32, i32
  }
  func.func @transform_5(%arg0: i32) -> (i32, i32) {
    %c0_i32 = arith.constant 0 : i32
    %c0_i32_0 = arith.constant 0 : i32
    return %arg0, %c0_i32 : i32, i32
  }
}

</mosaic_0001>

<llo_original>
// kernel: tpu_custom_call.1
$region0: #{tpu_custom_call.1}
  #allocation0 [shape = 'u32[]', space=smem, size = 0x4, offset = 0x4, fixed_abs, tag = 'smem constant byte address 0x4 - core index']
  #allocation1 [shape = 'u32[144,128]{1,0:T(1,128)}', space=vmem, size = 0x12000, scoped, tag = 'internal scratch']
  %s0 = inlined_call_operand.hbm [shape: f32[32,228], index: 0, kind: input, shape index: {}]
  %s1 = inlined_call_operand.hbm [shape: f32[228,128], index: 1, kind: input, shape index: {}]
  %s2 = inlined_call_operand.vmem [shape: f32[1,128], index: 2, kind: input, shape index: {}]
  %s3 = inlined_call_operand.hbm [shape: f32[128,128], index: 3, kind: input, shape index: {}]
  %s4 = inlined_call_operand.vmem [shape: f32[1,128], index: 4, kind: input, shape index: {}]
  %s5 = inlined_call_operand.hbm [shape: f32[32,128], index: 5, kind: output, shape index: {}]
  %s6 = sld [smem:[#allocation0]]
  $region42: #{tpu_custom_call.1} parent=0
    _
  %s8 = ssub.s32 1, %s6
  %s9 = scalar_select 0, %s8, %s6
  $region1: #{tpu_custom_call.1} parent=0
    #allocation2 [shape = 'u8[32768]{0}', space=vmem, size = 0x8000, scoped, tag = 'input window, operand 0, single buffered']
    #allocation3 [shape = 's32[1]{0}', space=sflag, size = 0x4, scoped, tag = 'scoped memory for tpu_custom_call.1']
    #allocation4 [shape = 's32[1]{0}', space=sflag, size = 0x4, scoped, tag = 'scoped memory for tpu_custom_call.1']
    #allocation5 [shape = 'u8[118784]{0}', space=vmem, size = 0x1d000, scoped, tag = 'input window, operand 1, single buffered']
    #allocation6 [shape = 's32[1]{0}', space=sflag, size = 0x4, scoped, tag = 'scoped memory for tpu_custom_call.1']
    #allocation7 [shape = 'u8[65536]{0}', space=vmem, size = 0x10000, scoped, tag = 'input window, operand 3, single buffered']
    #allocation8 [shape = 'u8[16384]{0}', space=vmem, size = 0x4000, scoped, tag = 'output window, operand 0, single buffered']
    %10 = vsyncpa [#allocation3], 0
    %11 = vsyncpa [#allocation6], 0
    %12 = vsyncpa [#allocation4], 0
    // Predicated region
    $region2: #{tpu_custom_call.1} parent=1 // pred_check
      _
    $region3: #{tpu_custom_call.1} parent=1 // pred_check_branch
      %14 = sbr.rel (0) target = $region5
    $region4: #{tpu_custom_call.1} parent=1 // pred_region
      %s16 = ssub.s32 1024, 1024
      %17 = vsyncadd [#allocation3], %s16
      %s18 = sshll.u32 [#allocation2], 4
      %s19 = int_to_ptr.vmem [resolvable:$true] %s18
      %24 = dma.hbm_to_vmem [thread:$0]  %s0, 1024, %s19, [#allocation3], 256, 256, 16
    $region5: #{tpu_custom_call.1} parent=1 // pred_fallthru
      _
    // Predicated region
    $region6: #{tpu_custom_call.1} parent=1 // pred_check
      _
    $region7: #{tpu_custom_call.1} parent=1 // pred_check_branch
      %26 = sbr.rel (0) target = $region9
    $region8: #{tpu_custom_call.1} parent=1 // pred_region
      %s28 = ssub.s32 3712, 3712
      %29 = vsyncadd [#allocation6], %s28
      %s30 = sshll.u32 [#allocation5], 4
      %s31 = int_to_ptr.vmem [resolvable:$true] %s30
      %36 = dma.hbm_to_vmem [thread:$0]  %s1, 3712, %s31, [#allocation6], 128, 128, 8
    $region9: #{tpu_custom_call.1} parent=1 // pred_fallthru
      _
    // Predicated region
    $region10: #{tpu_custom_call.1} parent=1 // pred_check
      _
    $region11: #{tpu_custom_call.1} parent=1 // pred_check_branch
      %38 = sbr.rel (0) target = $region13
    $region12: #{tpu_custom_call.1} parent=1 // pred_region
      _
    $region13: #{tpu_custom_call.1} parent=1 // pred_fallthru
      _
    // Predicated region
    $region14: #{tpu_custom_call.1} parent=1 // pred_check
      _
    $region15: #{tpu_custom_call.1} parent=1 // pred_check_branch
      %40 = sbr.rel (0) target = $region17
    $region16: #{tpu_custom_call.1} parent=1 // pred_region
      %s42 = ssub.s32 2048, 2048
      %43 = vsyncadd [#allocation6], %s42
      %s44 = sshll.u32 [#allocation7], 4
      %s45 = int_to_ptr.vmem [resolvable:$true] %s44
      %50 = dma.hbm_to_vmem [thread:$0]  %s3, 2048, %s45, [#allocation6], 128, 128, 8
    $region17: #{tpu_custom_call.1} parent=1 // pred_fallthru
      _
    // Predicated region
    $region18: #{tpu_custom_call.1} parent=1 // pred_check
      _
    $region19: #{tpu_custom_call.1} parent=1 // pred_check_branch
      %52 = sbr.rel (0) target = $region21
    $region20: #{tpu_custom_call.1} parent=1 // pred_region
      _
    $region21: #{tpu_custom_call.1} parent=1 // pred_fallthru
      _
    // Predicated region
    $region22: #{tpu_custom_call.1} parent=1 // pred_check
      _
    $region23: #{tpu_custom_call.1} parent=1 // pred_check_branch
      %54 = sbr.rel (0) target = $region25
    $region24: #{tpu_custom_call.1} parent=1 // pred_region
      %55 = dma.done [#allocation3], 1024
    $region25: #{tpu_custom_call.1} parent=1 // pred_fallthru
      _
    // Predicated region
    $region26: #{tpu_custom_call.1} parent=1 // pred_check
      _
    $region27: #{tpu_custom_call.1} parent=1 // pred_check_branch
      %57 = sbr.rel (0) target = $region29
    $region28: #{tpu_custom_call.1} parent=1 // pred_region
      %58 = dma.done [#allocation6], 3712
    $region29: #{tpu_custom_call.1} parent=1 // pred_fallthru
      _
    // Predicated region
    $region30: #{tpu_custom_call.1} parent=1 // pred_check
      _
    $region31: #{tpu_custom_call.1} parent=1 // pred_check_branch
      %60 = sbr.rel (0) target = $region33
    $region32: #{tpu_custom_call.1} parent=1 // pred_region
      %61 = dma.done [#allocation6], 2048
    $region33: #{tpu_custom_call.1} parent=1 // pred_fallthru
      _
    %v62 = vld [vmem:[#allocation2] sm:$0xff]
    %v63 = vld [vmem:[#allocation2 + $0x8] sm:$0xff]
    %v64 = vld [vmem:[#allocation2 + $0x10] sm:$0xff]
    %v65 = vld [vmem:[#allocation2 + $0x18] sm:$0xff]
    %v66 = vld [vmem:[#allocation2 + $0x20] sm:$0xff]
    %v67 = vld [vmem:[#allocation2 + $0x28] sm:$0xff]
    %v68 = vld [vmem:[#allocation2 + $0x30] sm:$0xff]
    %v69 = vld [vmem:[#allocation2 + $0x38] sm:$0xff]
    %v70 = vld [vmem:[#allocation5] sm:$0xff]
    %v71 = vld [vmem:[#allocation5 + $0x8] sm:$0xff]
    %v72 = vld [vmem:[#allocation5 + $0x10] sm:$0xff]
    %v73 = vld [vmem:[#allocation5 + $0x18] sm:$0xff]
    %v74 = vld [vmem:[#allocation5 + $0x20] sm:$0xff]
    %v75 = vld [vmem:[#allocation5 + $0x28] sm:$0xff]
    %v76 = vld [vmem:[#allocation5 + $0x30] sm:$0xff]
    %v77 = vld [vmem:[#allocation5 + $0x38] sm:$0xff]
    %v78 = vld [vmem:[#allocation5 + $0x40] sm:$0xff]
    %v79 = vld [vmem:[#allocation5 + $0x48] sm:$0xff]
    %v80 = vld [vmem:[#allocation5 + $0x50] sm:$0xff]
    %v81 = vld [vmem:[#allocation5 + $0x58] sm:$0xff]
    %v82 = vld [vmem:[#allocation5 + $0x60] sm:$0xff]
    %v83 = vld [vmem:[#allocation5 + $0x68] sm:$0xff]
    %v84 = vld [vmem:[#allocation5 + $0x70] sm:$0xff]
    %v85 = vld [vmem:[#allocation5 + $0x78] sm:$0xff]
    %v86 = vld [vmem:[#allocation5 + $0x80] sm:$0xff]
    %v87 = vld [vmem:[#allocation5 + $0x88] sm:$0xff]
    %v88 = vld [vmem:[#allocation5 + $0x90] sm:$0xff]
    %v89 = vld [vmem:[#allocation5 + $0x98] sm:$0xff]
    %v90 = vld [vmem:[#allocation5 + $0xa0] sm:$0xff]
    %v91 = vld [vmem:[#allocation5 + $0xa8] sm:$0xff]
    %v92 = vld [vmem:[#allocation5 + $0xb0] sm:$0xff]
    %v93 = vld [vmem:[#allocation5 + $0xb8] sm:$0xff]
    %v94 = vld [vmem:[#allocation5 + $0xc0] sm:$0xff]
    %v95 = vld [vmem:[#allocation5 + $0xc8] sm:$0xff]
    %v96 = vld [vmem:[#allocation5 + $0xd0] sm:$0xff]
    %v97 = vld [vmem:[#allocation5 + $0xd8] sm:$0xff]
    %v98 = vld [vmem:[#allocation5 + $0xe0] sm:$0xf]
    %v99 = vld [vmem:[%s2] sm:$0x1]
    %v101 = vlaneseq
    %v102 = vshrl.u32 %v101, 7
    %v103 = vsub.s32 0, %v102
    %v104 = vrot.slane %v99, %v103
    %vm106 = vcmask 818176
    %v108 = vsel %vm106, %v63, 0
    %v111 = vsel %vm106, %v65, 0
    %v114 = vsel %vm106, %v67, 0
    %v117 = vsel %vm106, %v69, 0
    %vm119 = vcmask 1043456
    %v121 = vsel %vm119, %v98, 0
    %123 = vmatprep.subr.mxu0 0.0
    %124 = vmatpush1.msra.mxu0 %v70
    %125 = vmatprep.subr.mxu0 0.0
    %126 = vmatpush1.msra.mxu0 %v71
    %127 = vmatprep.subr.mxu0 0.0
    %128 = vmatpush1.msra.mxu0 %v72
    %129 = vmatprep.subr.mxu0 0.0
    %130 = vmatpush1.msra.mxu0 %v73
    %131 = vmatprep.subr.mxu0 0.0
    %132 = vmatpush1.msra.mxu0 %v74
    %133 = vmatprep.subr.mxu0 0.0
    %134 = vmatpush1.msra.mxu0 %v75
    %135 = vmatprep.subr.mxu0 0.0
    %136 = vmatpush1.msra.mxu0 %v76
    %137 = vmatprep.subr.mxu0 0.0
    %138 = vmatpush1.msra.mxu0 %v77
    %139 = vmatprep.subr.mxu0 0.0
    %140 = vmatpush1.msra.mxu0 %v78
    %141 = vmatprep.subr.mxu0 0.0
    %142 = vmatpush1.msra.mxu0 %v79
    %143 = vmatprep.subr.mxu0 0.0
    %144 = vmatpush1.msra.mxu0 %v80
    %145 = vmatprep.subr.mxu0 0.0
    %146 = vmatpush1.msra.mxu0 %v81
    %147 = vmatprep.subr.mxu0 0.0
    %148 = vmatpush1.msra.mxu0 %v82
    %149 = vmatprep.subr.mxu0 0.0
    %150 = vmatpush1.msra.mxu0 %v83
    %151 = vmatprep.subr.mxu0 0.0
    %152 = vmatpush1.msra.mxu0 %v84
    %153 = vmatprep.subr.mxu0 0.0
    %154 = vmatpush1.msra.mxu0 %v85
    %155 = vmatprep.subr.mxu0 0.0
    %156 = vmatpush1.msra.mxu0 %v86
    %157 = vmatprep.subr.mxu0 0.0
    %158 = vmatpush1.msra.mxu0 %v87
    %159 = vmatprep.subr.mxu0 0.0
    %160 = vmatpush1.msra.mxu0 %v88
    %161 = vmatprep.subr.mxu0 0.0
    %162 = vmatpush1.msra.mxu0 %v89
    %163 = vmatprep.subr.mxu0 0.0
    %164 = vmatpush1.msra.mxu0 %v90
    %165 = vmatprep.subr.mxu0 0.0
    %166 = vmatpush1.msra.mxu0 %v91
    %167 = vmatprep.subr.mxu0 0.0
    %168 = vmatpush1.msra.mxu0 %v92
    %169 = vmatprep.subr.mxu0 0.0
    %170 = vmatpush1.msra.mxu0 %v93
    %171 = vmatprep.subr.mxu0 0.0
    %172 = vmatpush1.msra.mxu0 %v94
    %173 = vmatprep.subr.mxu0 0.0
    %174 = vmatpush1.msra.mxu0 %v95
    %175 = vmatprep.subr.mxu0 0.0
    %176 = vmatpush1.msra.mxu0 %v96
    %177 = vmatprep.subr.mxu0 0.0
    %178 = vmatpush1.msra.mxu0 %v97
    %179 = vmatprep.subr.mxu0 0.0
    %180 = vmatpush1.msra.mxu0 %v121
    %181 = vmatprep.subr.mxu0 0.0
    %182 = vmatpush1.msra.mxu0 0.0
    %183 = vmatprep.subr.mxu0 0.0
    %184 = vmatpush1.msra.mxu0 0.0
    %185 = vmatprep.subr.mxu0 0.0
    %186 = vmatpush1.msra.mxu0 0.0
    %187 = vmatprep.mubr.f32.mxu0 %v108
    %188 = vmatmul.mubr.f32.gmra.mrb[0].mxu0 %v62
    %v189 = vpop.f32.mrb[0].mxu0
    %v190 = vadd.f32 %v104, %v189
    %v191 = vpop.f32.mrb[0].mxu0
    %192 = vmatprep.mubr.f32.mxu0 %v111
    %193 = vmatmul.mubr.f32.gmra.mrb[0].mxu0 %v64
    %v194 = vpop.f32.mrb[0].mxu0
    %v195 = vadd.f32 %v104, %v194
    %v196 = vpop.f32.mrb[0].mxu0
    %197 = vmatprep.mubr.f32.mxu0 %v114
    %198 = vmatmul.mubr.f32.gmra.mrb[0].mxu0 %v66
    %v199 = vpop.f32.mrb[0].mxu0
    %v200 = vadd.f32 %v104, %v199
    %v201 = vpop.f32.mrb[0].mxu0
    %202 = vmatprep.mubr.f32.mxu0 %v117
    %203 = vmatmul.mubr.f32.gmra.mrb[0].mxu0 %v68
    %v204 = vpop.f32.mrb[0].mxu0
    %v205 = vadd.f32 %v104, %v204
    %v206 = vpop.f32.mrb[0].mxu0
    %207 = vdwg.mxu0
    %v208 = vmax.f32 %v190, 0.0
    %v209 = vmax.f32 %v195, 0.0
    %v210 = vmax.f32 %v200, 0.0
    %v211 = vmax.f32 %v205, 0.0
    %v212 = vld [vmem:[#allocation7] sm:$0xff]
    %v213 = vld [vmem:[#allocation7 + $0x8] sm:$0xff]
    %v214 = vld [vmem:[#allocation7 + $0x10] sm:$0xff]
    %v215 = vld [vmem:[#allocation7 + $0x18] sm:$0xff]
    %v216 = vld [vmem:[#allocation7 + $0x20] sm:$0xff]
    %v217 = vld [vmem:[#allocation7 + $0x28] sm:$0xff]
    %v218 = vld [vmem:[#allocation7 + $0x30] sm:$0xff]
    %v219 = vld [vmem:[#allocation7 + $0x38] sm:$0xff]
    %v220 = vld [vmem:[#allocation7 + $0x40] sm:$0xff]
    %v221 = vld [vmem:[#allocation7 + $0x48] sm:$0xff]
    %v222 = vld [vmem:[#allocation7 + $0x50] sm:$0xff]
    %v223 = vld [vmem:[#allocation7 + $0x58] sm:$0xff]
    %v224 = vld [vmem:[#allocation7 + $0x60] sm:$0xff]
    %v225 = vld [vmem:[#allocation7 + $0x68] sm:$0xff]
    %v226 = vld [vmem:[#allocation7 + $0x70] sm:$0xff]
    %v227 = vld [vmem:[#allocation7 + $0x78] sm:$0xff]
    %v228 = vld [vmem:[%s4] sm:$0x1]
    %v230 = vlaneseq
    %v231 = vshrl.u32 %v230, 7
    %v232 = vsub.s32 0, %v231
    %v233 = vrot.slane %v228, %v232
    %235 = vmatprep.subr.mxu0 0.0
    %236 = vmatpush1.msra.mxu0 %v212
    %237 = vmatprep.subr.mxu0 0.0
    %238 = vmatpush1.msra.mxu0 %v213
    %239 = vmatprep.subr.mxu0 0.0
    %240 = vmatpush1.msra.mxu0 %v214
    %241 = vmatprep.subr.mxu0 0.0
    %242 = vmatpush1.msra.mxu0 %v215
    %243 = vmatprep.subr.mxu0 0.0
    %244 = vmatpush1.msra.mxu0 %v216
    %245 = vmatprep.subr.mxu0 0.0
    %246 = vmatpush1.msra.mxu0 %v217
    %247 = vmatprep.subr.mxu0 0.0
    %248 = vmatpush1.msra.mxu0 %v218
    %249 = vmatprep.subr.mxu0 0.0
    %250 = vmatpush1.msra.mxu0 %v219
    %251 = vmatprep.subr.mxu0 0.0
    %252 = vmatpush1.msra.mxu0 %v220
    %253 = vmatprep.subr.mxu0 0.0
    %254 = vmatpush1.msra.mxu0 %v221
    %255 = vmatprep.subr.mxu0 0.0
    %256 = vmatpush1.msra.mxu0 %v222
    %257 = vmatprep.subr.mxu0 0.0
    %258 = vmatpush1.msra.mxu0 %v223
    %259 = vmatprep.subr.mxu0 0.0
    %260 = vmatpush1.msra.mxu0 %v224
    %261 = vmatprep.subr.mxu0 0.0
    %262 = vmatpush1.msra.mxu0 %v225
    %263 = vmatprep.subr.mxu0 0.0
    %264 = vmatpush1.msra.mxu0 %v226
    %265 = vmatprep.subr.mxu0 0.0
    %266 = vmatpush1.msra.mxu0 %v227
    %267 = vmatprep.subr.mxu0 0.0
    %268 = vmatpush1.msra.mxu0 0.0
    %269 = vmatprep.subr.mxu0 0.0
    %270 = vmatpush1.msra.mxu0 0.0
    %271 = vmatprep.subr.mxu0 0.0
    %272 = vmatpush1.msra.mxu0 0.0
    %273 = vmatprep.subr.mxu0 0.0
    %274 = vmatpush1.msra.mxu0 0.0
    %275 = vmatprep.subr.mxu0 0.0
    %276 = vmatpush1.msra.mxu0 0.0
    %277 = vmatprep.subr.mxu0 0.0
    %278 = vmatpush1.msra.mxu0 0.0
    %279 = vmatprep.subr.mxu0 0.0
    %280 = vmatpush1.msra.mxu0 0.0
    %281 = vmatprep.subr.mxu0 0.0
    %282 = vmatpush1.msra.mxu0 0.0
    %283 = vmatprep.subr.mxu0 0.0
    %284 = vmatpush1.msra.mxu0 0.0
    %285 = vmatprep.subr.mxu0 0.0
    %286 = vmatpush1.msra.mxu0 0.0
    %287 = vmatprep.subr.mxu0 0.0
    %288 = vmatpush1.msra.mxu0 0.0
    %289 = vmatprep.subr.mxu0 0.0
    %290 = vmatpush1.msra.mxu0 0.0
    %291 = vmatprep.subr.mxu0 0.0
    %292 = vmatpush1.msra.mxu0 0.0
    %293 = vmatprep.subr.mxu0 0.0
    %294 = vmatpush1.msra.mxu0 0.0
    %295 = vmatprep.subr.mxu0 0.0
    %296 = vmatpush1.msra.mxu0 0.0
    %297 = vmatprep.subr.mxu0 0.0
    %298 = vmatpush1.msra.mxu0 0.0
    %299 = vmatprep.mubr.f32.mxu0 0.0
    %300 = vmatmul.mubr.f32.gmra.mrb[0].mxu0 %v208
    %v301 = vpop.f32.mrb[0].mxu0
    %v302 = vadd.f32 %v233, %v301
    %v303 = vpop.f32.mrb[0].mxu0
    %304 = vmatprep.mubr.f32.mxu0 0.0
    %305 = vmatmul.mubr.f32.gmra.mrb[0].mxu0 %v209
    %v306 = vpop.f32.mrb[0].mxu0
    %v307 = vadd.f32 %v233, %v306
    %v308 = vpop.f32.mrb[0].mxu0
    %309 = vmatprep.mubr.f32.mxu0 0.0
    %310 = vmatmul.mubr.f32.gmra.mrb[0].mxu0 %v210
    %v311 = vpop.f32.mrb[0].mxu0
    %v312 = vadd.f32 %v233, %v311
    %v313 = vpop.f32.mrb[0].mxu0
    %314 = vmatprep.mubr.f32.mxu0 0.0
    %315 = vmatmul.mubr.f32.gmra.mrb[0].mxu0 %v211
    %v316 = vpop.f32.mrb[0].mxu0
    %v317 = vadd.f32 %v233, %v316
    %v318 = vpop.f32.mrb[0].mxu0
    %319 = vdwg.mxu0
    %320 = vst [vmem:[#allocation8] sm:$0xff] %v302
    %321 = vst [vmem:[#allocation8 + $0x8] sm:$0xff] %v307
    %322 = vst [vmem:[#allocation8 + $0x10] sm:$0xff] %v312
    %323 = vst [vmem:[#allocation8 + $0x18] sm:$0xff] %v317
    // Predicated region
    $region34: #{tpu_custom_call.1} parent=1 // pred_check
      _
    $region35: #{tpu_custom_call.1} parent=1 // pred_check_branch
      %325 = sbr.rel (0) target = $region37
    $region36: #{tpu_custom_call.1} parent=1 // pred_region
      %s327 = ssub.s32 512, 512
      %328 = vsyncadd [#allocation4], %s327
      %s329 = sshll.u32 [#allocation8], 4
      %s330 = int_to_ptr.vmem [resolvable:$true] %s329
      %335 = dma.vmem_to_hbm [thread:$0]  %s330, 512, %s5, [#allocation4], 128, 128, 8
    $region37: #{tpu_custom_call.1} parent=1 // pred_fallthru
      _
    // Predicated region
    $region38: #{tpu_custom_call.1} parent=1 // pred_check
      _
    $region39: #{tpu_custom_call.1} parent=1 // pred_check_branch
      %337 = sbr.rel (0) target = $region41
    $region40: #{tpu_custom_call.1} parent=1 // pred_region
      %338 = dma.done [#allocation4], 512
    $region41: #{tpu_custom_call.1} parent=1 // pred_fallthru
      _
    %339 = vsyncpa [#allocation3], 1
    %340 = vsyncpa [#allocation6], 1
    %341 = vsyncpa [#allocation4], 1

</llo_original>
